<compile_context>
chip_gen: v5e
topology: v5e:2x2
jax: 0.10.0
libtpu: 0.0.40
codegen_flags: <defaults>
</compile_context>

<pallas_src>
import functools
import math

import jax
import jax.numpy as jnp
from jax.experimental import pallas as pl
from jax.experimental.pallas import tpu as pltpu


def _ceil_div(a: int, b: int) -> int:
    return -(-a // b)


def _pow_static(x, p):
    """x ** p for a static Python exponent (exact repeated multiply for small ints)."""
    p = float(p)
    if p == int(p) and 0 <= int(p) <= 8:
        n = int(p)
        if n == 0:
            return jnp.ones_like(x)
        r = x
        for _ in range(n - 1):
            r = r * x
        return r
    # TODO(synk): non-integer gamma falls back to exp/log (differs from torch.pow only at pt == 0).
    return jnp.exp(p * jnp.log(jnp.maximum(x, jnp.float32(1e-30))))


def _focal_kernel(x_ref, t_ref, w_ref, e_ref, o_ref, *, gamma, alpha, polyloss):
    # x_ref, t_ref, o_ref: (TR, TL) lane-dense element blocks
    # w_ref:               (TR, G)  per-anchor weights, G = TL // C
    # e_ref:               (G, TL)  0/1 expansion matrix (constant index_map -> DMA'd once)
    x = x_ref[...]
    t = t_ref[...]

    # Expand per-anchor weights to per-element weights on the idle MXU.
    # E[g, l] = 1 iff l // C == g, so each output picks exactly one weight.
    # HIGHEST precision splits the f32 weights losslessly -> exact result.
    w = jnp.dot(
        w_ref[...],
        e_ref[...],
        preferred_element_type=jnp.float32,
        precision=jax.lax.Precision.HIGHEST,
    )

    # Shared-exp sigmoid / BCE: one EUP exp, one divide, one log1p per element.
    e = jnp.exp(-jnp.abs(x))                       # exp(-|x|)
    r = 1.0 / (1.0 + e)
    pred_sigmoid = jnp.where(x >= 0.0, r, e * r)   # sigmoid(x)

    # alpha_weight = t*alpha + (1-t)*(1-alpha) = (2*alpha-1)*t + (1-alpha)
    alpha_weight = (2.0 * alpha - 1.0) * t + (1.0 - alpha)
    # pt = t*(1-s) + (1-t)*s = s + t*(1-2s)
    pt = pred_sigmoid + t * (1.0 - 2.0 * pred_sigmoid)
    focal_weight = alpha_weight * _pow_static(pt, gamma)

    # sigmoid_cross_entropy_with_logits: max(x,0) - x*z + log1p(exp(-|x|))
    bce = jnp.maximum(x, 0.0) - x * t + jnp.log1p(e)

    loss = focal_weight * bce
    if polyloss:
        loss = loss + _pow_static(pt, gamma + 1.0) * alpha_weight

    o_ref[...] = loss * w


def _pick_row_tile(rows: int, TL: int) -> int:
    # ~4 MiB per (TR, TL) f32 block: 3 element arrays double-buffered + compact
    # weights ~= 26 MiB VMEM, big enough to amortize per-step overhead.
    cap = max(8, ((4 * 1024 * 1024) // (TL * 4)) // 8 * 8)
    return rows if rows <= cap else cap


def _run_focal(x2, t2, w2, *, gamma, alpha, polyloss):
    rows, TL = x2.shape
    G = w2.shape[1]
    C = TL // G

    TR = _pick_row_tile(rows, TL)
    nblk = _ceil_div(rows, TR)

    # 0/1 expansion matrix (tiny: G x TL, G <= 128), built once outside the kernel.
    lane_anchor = jax.lax.broadcasted_iota(jnp.int32, (G, TL), 1) // C
    row_anchor = jax.lax.broadcasted_iota(jnp.int32, (G, TL), 0)
    expand = (lane_anchor == row_anchor).astype(jnp.float32)

    kernel = functools.partial(
        _focal_kernel, gamma=float(gamma), alpha=float(alpha), polyloss=bool(polyloss)
    )

    return pl.pallas_call(
        kernel,
        out_shape=jax.ShapeDtypeStruct((rows, TL), jnp.float32),
        grid_spec=pltpu.PrefetchScalarGridSpec(
            num_scalar_prefetch=0,
            grid=(nblk,),
            in_specs=[
                pl.BlockSpec((TR, TL), lambda r: (r, 0)),  # logits
                pl.BlockSpec((TR, TL), lambda r: (r, 0)),  # targets
                pl.BlockSpec((TR, G), lambda r: (r, 0)),   # per-anchor weights (compact)
                pl.BlockSpec((G, TL), lambda r: (0, 0)),   # expansion matrix (resident)
            ],
            out_specs=pl.BlockSpec((TR, TL), lambda r: (r, 0)),
        ),
        compiler_params=pltpu.CompilerParams(
            dimension_semantics=("parallel",),
            vmem_limit_bytes=48 * 1024 * 1024,
        ),
    )(x2, t2, w2, expand)


def sigmoid_focal_classification_loss(
    inputs,
    target,
    weights,
    *,
    gamma: float = 2.0,
    alpha: float = 0.25,
    polyloss: bool = False,
):
    """Forward pass of SigmoidFocalClassificationLoss.

    inputs/target: (B, #anchors, #classes) float; weights: (B, #anchors) float.
    Returns weighted loss of shape (B, #anchors, #classes).
    """
    if inputs.shape != target.shape:
        # Matches the PyTorch module's defensive early-return.
        return jnp.zeros_like(inputs)

    B, A, C = inputs.shape
    assert weights.shape == (B, A), "weights must be (B, #anchors)"

    inputs = inputs.astype(jnp.float32)
    target = target.astype(jnp.float32)
    weights = weights.astype(jnp.float32)

    total = B * A * C
    TL = (C * 128) // math.gcd(C, 128)  # lcm(C, 128): smallest lane-dense width
    G = TL // C                         # anchors per flattened row

    if total % TL == 0:
        # Zero-copy path: contiguous reshapes only (no pad / no output slice).
        rows = total // TL
        x2 = inputs.reshape(rows, TL)
        t2 = target.reshape(rows, TL)
        w2 = weights.reshape(rows, G)
        out2 = _run_focal(x2, t2, w2, gamma=gamma, alpha=alpha, polyloss=polyloss)
        return out2.reshape(B, A, C)

    # TODO(synk): ragged total falls back to pad + slice (one extra HBM copy each way);
    # production anchor counts normally hit the zero-copy branch above.
    rows = _ceil_div(total, TL)
    pad_e = rows * TL - total
    pad_a = rows * G - B * A
    x2 = jnp.pad(inputs.reshape(-1), (0, pad_e)).reshape(rows, TL)
    t2 = jnp.pad(target.reshape(-1), (0, pad_e)).reshape(rows, TL)
    w2 = jnp.pad(weights.reshape(-1), (0, pad_a)).reshape(rows, G)
    out2 = _run_focal(x2, t2, w2, gamma=gamma, alpha=alpha, polyloss=polyloss)
    return out2.reshape(-1)[:total].reshape(B, A, C)


def _reference(inputs, target, weights, gamma=2.0, alpha=0.25, polyloss=False):
    """Pure-JAX transcription of the PyTorch forward()."""
    pred_sigmoid = jax.nn.sigmoid(inputs)
    alpha_weight = target * alpha + (1.0 - target) * (1.0 - alpha)
    pt = target * (1.0 - pred_sigmoid) + (1.0 - target) * pred_sigmoid
    focal_weight = alpha_weight * jnp.power(pt, gamma)
    bce = jnp.maximum(inputs, 0.0) - inputs * target + jnp.log1p(jnp.exp(-jnp.abs(inputs)))
    loss = focal_weight * bce
    if polyloss:
        loss = loss + jnp.power(pt, gamma + 1.0) * alpha_weight
    return loss * weights[..., None]


if __name__ == "__main__":
    key = jax.random.PRNGKey(0)
    k1, k2, k3 = jax.random.split(key, 3)

    B, A, C = 2, 256, 4  # (batch, #anchors, #classes)
    logits = jax.random.normal(k1, (B, A, C), dtype=jnp.float32)
    cls_idx = jax.random.randint(k2, (B, A), 0, C)
    target = jax.nn.one_hot(cls_idx, C, dtype=jnp.float32)
    # Anchor-wise weights (e.g. 1 / num_positives style normalization).
    weights = jnp.round(jax.random.uniform(k3, (B, A), dtype=jnp.float32) * 128.0) / 128.0

    # Default (focal) path.
    out = sigmoid_focal_classification_loss(logits, target, weights)
    out = jax.block_until_ready(out)
    ref = _reference(logits, target, weights)
    assert out.shape == (B, A, C)
    err = float(jnp.max(jnp.abs(out - ref)))
    assert jnp.allclose(out, ref, atol=1e-5, rtol=1e-5), f"focal mismatch: {err}"

    # Polyloss variant.
    out_p = sigmoid_focal_classification_loss(logits, target, weights, polyloss=True)
    out_p = jax.block_until_ready(out_p)
    ref_p = _reference(logits, target, weights, polyloss=True)
    err_p = float(jnp.max(jnp.abs(out_p - ref_p)))
    assert jnp.allclose(out_p, ref_p, atol=1e-5, rtol=1e-5), f"polyloss mismatch: {err_p}"

    print("KERNEL_OK")
</pallas_src>

<mosaic_0001>
module attributes {stable_mosaic.version = 11 : i64} {
  func.func @_focal_kernel(%arg0: i32, %arg1: memref<16x128xf32, #tpu.memory_space<vmem>>, %arg2: memref<16x128xf32, #tpu.memory_space<vmem>>, %arg3: memref<16x32xf32, #tpu.memory_space<vmem>>, %arg4: memref<32x128xf32, #tpu.memory_space<vmem>>, %arg5: memref<16x128xf32, #tpu.memory_space<vmem>>) attributes {dimension_semantics = [#tpu.dimension_semantics<parallel>], iteration_bounds = array<i64: 1>, scalar_prefetch = 0 : i64, scratch_operands = 0 : i64, tpu.core_type = #tpu.core_type<tc>, window_params = [{transform_indices = @transform_0, window_bounds = array<i64: 16, 128>}, {transform_indices = @transform_1, window_bounds = array<i64: 16, 128>}, {transform_indices = @transform_2, window_bounds = array<i64: 16, 32>}, {pipeline_mode = #tpu.pipeline_mode<synchronous>, transform_indices = @transform_3, window_bounds = array<i64: 32, 128>}, {transform_indices = @transform_4, window_bounds = array<i64: 16, 128>}]} {
    %c0 = arith.constant 0 : index
    %c0_0 = arith.constant 0 : index
    %0 = vector.load %arg1[%c0, %c0_0] : memref<16x128xf32, #tpu.memory_space<vmem>>, vector<16x128xf32>
    %c0_1 = arith.constant 0 : index
    %c0_2 = arith.constant 0 : index
    %1 = vector.load %arg2[%c0_1, %c0_2] : memref<16x128xf32, #tpu.memory_space<vmem>>, vector<16x128xf32>
    %c0_3 = arith.constant 0 : index
    %c0_4 = arith.constant 0 : index
    %2 = vector.load %arg3[%c0_3, %c0_4] : memref<16x32xf32, #tpu.memory_space<vmem>>, vector<16x32xf32>
    %c0_5 = arith.constant 0 : index
    %c0_6 = arith.constant 0 : index
    %3 = vector.load %arg4[%c0_5, %c0_6] : memref<32x128xf32, #tpu.memory_space<vmem>>, vector<32x128xf32>
    %cst = arith.constant dense<0.000000e+00> : vector<16x128xf32>
    %4 = tpu.matmul %2, %3, %cst {dimension_numbers = #tpu.dot_dimension_numbers<[1], [0], [0], [1], [0, 0, 1, 1], [], []>, precision = #tpu.contract_precision<fp32>} : vector<16x32xf32>, vector<32x128xf32>, vector<16x128xf32> -> vector<16x128xf32>
    %5 = math.absf %0 : vector<16x128xf32>
    %cst_7 = arith.constant 0.000000e+00 : f32
    %6 = vector.broadcast %cst_7 : f32 to vector<16x128xf32>
    %7 = arith.subf %6, %5 : vector<16x128xf32>
    %8 = math.exp %7 : vector<16x128xf32>
    %cst_8 = arith.constant 1.000000e+00 : f32
    %9 = vector.broadcast %cst_8 : f32 to vector<16x128xf32>
    %10 = arith.addf %9, %8 : vector<16x128xf32>
    %cst_9 = arith.constant 1.000000e+00 : f32
    %11 = vector.broadcast %cst_9 : f32 to vector<16x128xf32>
    %12 = arith.divf %11, %10 : vector<16x128xf32>
    %cst_10 = arith.constant 0.000000e+00 : f32
    %13 = vector.broadcast %cst_10 : f32 to vector<16x128xf32>
    %14 = arith.cmpf oge, %0, %13 : vector<16x128xf32>
    %15 = arith.mulf %8, %12 : vector<16x128xf32>
    %16 = arith.select %14, %12, %15 : vector<16x128xi1>, vector<16x128xf32>
    %cst_11 = arith.constant -5.000000e-01 : f32
    %17 = vector.broadcast %cst_11 : f32 to vector<16x128xf32>
    %18 = arith.mulf %17, %1 : vector<16x128xf32>
    %cst_12 = arith.constant 7.500000e-01 : f32
    %19 = vector.broadcast %cst_12 : f32 to vector<16x128xf32>
    %20 = arith.addf %18, %19 : vector<16x128xf32>
    %cst_13 = arith.constant 2.000000e+00 : f32
    %21 = vector.broadcast %cst_13 : f32 to vector<16x128xf32>
    %22 = arith.mulf %21, %16 : vector<16x128xf32>
    %cst_14 = arith.constant 1.000000e+00 : f32
    %23 = vector.broadcast %cst_14 : f32 to vector<16x128xf32>
    %24 = arith.subf %23, %22 : vector<16x128xf32>
    %25 = arith.mulf %1, %24 : vector<16x128xf32>
    %26 = arith.addf %16, %25 : vector<16x128xf32>
    %27 = arith.mulf %26, %26 : vector<16x128xf32>
    %28 = arith.mulf %20, %27 : vector<16x128xf32>
    %cst_15 = arith.constant 0.000000e+00 : f32
    %29 = vector.broadcast %cst_15 : f32 to vector<16x128xf32>
    %30 = arith.maximumf %0, %29 : vector<16x128xf32>
    %31 = arith.mulf %0, %1 : vector<16x128xf32>
    %32 = arith.subf %30, %31 : vector<16x128xf32>
    %33 = math.log1p %8 : vector<16x128xf32>
    %34 = arith.addf %32, %33 : vector<16x128xf32>
    %35 = arith.mulf %28, %34 : vector<16x128xf32>
    %36 = arith.mulf %35, %4 : vector<16x128xf32>
    %c0_16 = arith.constant 0 : index
    %c0_17 = arith.constant 0 : index
    %37 = vector.load %arg5[%c0_16, %c0_17] : memref<16x128xf32, #tpu.memory_space<vmem>>, vector<16x128xf32>
    tpu.vector_store %arg5[%c0_16, %c0_17], %36 {strides = array<i32>} : memref<16x128xf32, #tpu.memory_space<vmem>>, vector<16x128xf32>,
    return
  }
  func.func @transform_0(%arg0: i32) -> (i32, i32) {
    %c0_i32 = arith.constant 0 : i32
    %c0_i32_0 = arith.constant 0 : i32
    return %arg0, %c0_i32 : i32, i32
  }
  func.func @transform_1(%arg0: i32) -> (i32, i32) {
    %c0_i32 = arith.constant 0 : i32
    %c0_i32_0 = arith.constant 0 : i32
    return %arg0, %c0_i32 : i32, i32
  }
  func.func @transform_2(%arg0: i32) -> (i32, i32) {
    %c0_i32 = arith.constant 0 : i32
    %c0_i32_0 = arith.constant 0 : i32
    return %arg0, %c0_i32 : i32, i32
  }
  func.func @transform_3(%arg0: i32) -> (i32, i32) {
    %c0_i32 = arith.constant 0 : i32
    %c0_i32_0 = arith.constant 0 : i32
    %c0_i32_1 = arith.constant 0 : i32
    return %c0_i32, %c0_i32_0 : i32, i32
  }
  func.func @transform_4(%arg0: i32) -> (i32, i32) {
    %c0_i32 = arith.constant 0 : i32
    %c0_i32_0 = arith.constant 0 : i32
    return %arg0, %c0_i32 : i32, i32
  }
}

</mosaic_0001>

<llo_original>
// kernel: tpu_custom_call.1
$region0: #{tpu_custom_call.1}
  #allocation0 [shape = 'u32[]', space=smem, size = 0x4, offset = 0x4, fixed_abs, tag = 'smem constant byte address 0x4 - core index']
  #allocation1 [shape = 'u32[72,128]{1,0:T(1,128)}', space=vmem, size = 0x9000, scoped, tag = 'internal scratch']
  %s0 = inlined_call_operand.hbm [shape: f32[16,128], index: 0, kind: input, shape index: {}]
  %s1 = inlined_call_operand.hbm [shape: f32[16,128], index: 1, kind: input, shape index: {}]
  %s2 = inlined_call_operand.hbm [shape: f32[16,32], index: 2, kind: input, shape index: {}]
  %s3 = inlined_call_operand.hbm [shape: f32[32,128], index: 3, kind: input, shape index: {}]
  %s4 = inlined_call_operand.hbm [shape: f32[16,128], index: 4, kind: output, shape index: {}]
  %s5 = sld [smem:[#allocation0]]
  $region42: #{tpu_custom_call.1} parent=0
    _
  %s7 = ssub.s32 1, %s5
  %s8 = scalar_select 0, %s7, %s5
  $region1: #{tpu_custom_call.1} parent=0
    #allocation2 [shape = 'u8[8192]{0}', space=vmem, size = 0x2000, scoped, tag = 'input window, operand 0, single buffered']
    #allocation3 [shape = 's32[1]{0}', space=sflag, size = 0x4, scoped, tag = 'scoped memory for tpu_custom_call.1']
    #allocation4 [shape = 's32[1]{0}', space=sflag, size = 0x4, scoped, tag = 'scoped memory for tpu_custom_call.1']
    #allocation5 [shape = 'u8[8192]{0}', space=vmem, size = 0x2000, scoped, tag = 'input window, operand 1, single buffered']
    #allocation6 [shape = 's32[1]{0}', space=sflag, size = 0x4, scoped, tag = 'scoped memory for tpu_custom_call.1']
    #allocation7 [shape = 'u8[8192]{0}', space=vmem, size = 0x2000, scoped, tag = 'input window, operand 2, single buffered']
    #allocation8 [shape = 'u8[16384]{0}', space=vmem, size = 0x4000, scoped, tag = 'input window, operand 3, single buffered']
    #allocation9 [shape = 's32[1]{0}', space=sflag, size = 0x4, scoped, tag = 'scoped memory for tpu_custom_call.1']
    #allocation10 [shape = 'u8[8192]{0}', space=vmem, size = 0x2000, scoped, tag = 'output window, operand 0, single buffered']
    %9 = vsyncpa [#allocation3], 0
    %10 = vsyncpa [#allocation6], 0
    %11 = vsyncpa [#allocation9], 0
    %12 = vsyncpa [#allocation4], 0
    // Predicated region
    $region2: #{tpu_custom_call.1} parent=1 // pred_check
      _
    $region3: #{tpu_custom_call.1} parent=1 // pred_check_branch
      %14 = sbr.rel (0) target = $region5
    $region4: #{tpu_custom_call.1} parent=1 // pred_region
      %16 = vsyncadd [#allocation3], 0
      %s17 = sshll.u32 %s0, 4
      %s18 = int_to_ptr.hbm [resolvable:$true] %s17
      %s19 = sshll.u32 [#allocation2], 4
      %s20 = int_to_ptr.vmem [resolvable:$true] %s19
      %25 = dma.hbm_to_vmem [thread:$0]  %s18, 256, %s20, [#allocation3], 128, 128, 8
    $region5: #{tpu_custom_call.1} parent=1 // pred_fallthru
      _
    // Predicated region
    $region6: #{tpu_custom_call.1} parent=1 // pred_check
      _
    $region7: #{tpu_custom_call.1} parent=1 // pred_check_branch
      %27 = sbr.rel (0) target = $region9
    $region8: #{tpu_custom_call.1} parent=1 // pred_region
      %29 = vsyncadd [#allocation6], 0
      %s30 = sshll.u32 %s1, 4
      %s31 = int_to_ptr.hbm [resolvable:$true] %s30
      %s32 = sshll.u32 [#allocation5], 4
      %s33 = int_to_ptr.vmem [resolvable:$true] %s32
      %38 = dma.hbm_to_vmem [thread:$0]  %s31, 256, %s33, [#allocation6], 128, 128, 8
    $region9: #{tpu_custom_call.1} parent=1 // pred_fallthru
      _
    // Predicated region
    $region10: #{tpu_custom_call.1} parent=1 // pred_check
      _
    $region11: #{tpu_custom_call.1} parent=1 // pred_check_branch
      %40 = sbr.rel (0) target = $region13
    $region12: #{tpu_custom_call.1} parent=1 // pred_region
      %42 = vsyncadd [#allocation6], 0
      %s43 = sshll.u32 %s2, 4
      %s44 = int_to_ptr.hbm [resolvable:$true] %s43
      %s45 = sshll.u32 [#allocation7], 4
      %s46 = int_to_ptr.vmem [resolvable:$true] %s45
      %51 = dma.hbm_to_vmem [thread:$0]  %s44, 256, %s46, [#allocation6], 128, 128, 8
    $region13: #{tpu_custom_call.1} parent=1 // pred_fallthru
      _
    // Predicated region
    $region14: #{tpu_custom_call.1} parent=1 // pred_check
      _
    $region15: #{tpu_custom_call.1} parent=1 // pred_check_branch
      %53 = sbr.rel (0) target = $region17
    $region16: #{tpu_custom_call.1} parent=1 // pred_region
      %55 = vsyncadd [#allocation9], 0
      %s56 = sshll.u32 %s3, 4
      %s57 = int_to_ptr.hbm [resolvable:$true] %s56
      %s58 = sshll.u32 [#allocation8], 4
      %s59 = int_to_ptr.vmem [resolvable:$true] %s58
      %64 = dma.hbm_to_vmem [thread:$0]  %s57, 512, %s59, [#allocation9], 128, 128, 8
    $region17: #{tpu_custom_call.1} parent=1 // pred_fallthru
      _
    // Predicated region
    $region18: #{tpu_custom_call.1} parent=1 // pred_check
      _
    $region19: #{tpu_custom_call.1} parent=1 // pred_check_branch
      %66 = sbr.rel (0) target = $region21
    $region20: #{tpu_custom_call.1} parent=1 // pred_region
      %68 = dma.done [#allocation3], 256
    $region21: #{tpu_custom_call.1} parent=1 // pred_fallthru
      _
    // Predicated region
    $region22: #{tpu_custom_call.1} parent=1 // pred_check
      _
    $region23: #{tpu_custom_call.1} parent=1 // pred_check_branch
      %70 = sbr.rel (0) target = $region25
    $region24: #{tpu_custom_call.1} parent=1 // pred_region
      %72 = dma.done [#allocation6], 256
    $region25: #{tpu_custom_call.1} parent=1 // pred_fallthru
      _
    // Predicated region
    $region26: #{tpu_custom_call.1} parent=1 // pred_check
      _
    $region27: #{tpu_custom_call.1} parent=1 // pred_check_branch
      %74 = sbr.rel (0) target = $region29
    $region28: #{tpu_custom_call.1} parent=1 // pred_region
      %76 = dma.done [#allocation6], 256
    $region29: #{tpu_custom_call.1} parent=1 // pred_fallthru
      _
    // Predicated region
    $region30: #{tpu_custom_call.1} parent=1 // pred_check
      _
    $region31: #{tpu_custom_call.1} parent=1 // pred_check_branch
      %78 = sbr.rel (0) target = $region33
    $region32: #{tpu_custom_call.1} parent=1 // pred_region
      %80 = dma.done [#allocation9], 512
    $region33: #{tpu_custom_call.1} parent=1 // pred_fallthru
      _
    %v81 = vld [vmem:[#allocation2] sm:$0xff]
    %v82 = vld [vmem:[#allocation2 + $0x8] sm:$0xff]
    %v83 = vld [vmem:[#allocation5] sm:$0xff]
    %v84 = vld [vmem:[#allocation5 + $0x8] sm:$0xff]
    %v85 = vld [vmem:[#allocation7] sm:$0xff]
    %v86 = vld [vmem:[#allocation7 + $0x8] sm:$0xff]
    %v87 = vld [vmem:[#allocation8] sm:$0xff]
    %v88 = vld [vmem:[#allocation8 + $0x8] sm:$0xff]
    %v89 = vld [vmem:[#allocation8 + $0x10] sm:$0xff]
    %v90 = vld [vmem:[#allocation8 + $0x18] sm:$0xff]
    %vm91 = vcmask 261120
    %v93 = vsel %vm91, %v85, 0
    %v96 = vsel %vm91, %v86, 0
    %98 = vmatpush.msra.mxu0 0.0
    %99 = vmatpush.msra.mxu0 0.0
    %100 = vmatpush.msra.mxu0 0.0
    %101 = vmatpush.msra.mxu0 0.0
    %102 = vmatpush.msra.mxu0 0.0
    %103 = vmatpush.msra.mxu0 0.0
    %104 = vmatpush.msra.mxu0 0.0
    %105 = vmatpush.msra.mxu0 0.0
    %106 = vmatpush.msra.mxu0 0.0
    %107 = vmatpush.msra.mxu0 0.0
    %108 = vmatpush.msra.mxu0 0.0
    %109 = vmatpush.msra.mxu0 0.0
    %v110 = vand.u32 %v90, 4294901760
    %111 = vmatpush.msra.mxu0 %v110
    %v112 = vand.u32 %v89, 4294901760
    %113 = vmatpush.msra.mxu0 %v112
    %v114 = vand.u32 %v88, 4294901760
    %115 = vmatpush.msra.mxu0 %v114
    %v116 = vand.u32 %v87, 4294901760
    %117 = vmatpush.msra.mxu0 %v116
    %v118 = vand.u32 %v93, 4294901760
    %v119 = vsub.f32 %v93, %v118
    %v120 = vand.u32 %v119, 4294901760
    %v121 = vsub.f32 %v119, %v120
    %v122 = vand.u32 %v121, 4294901760
    %123 = vmatmul.f32.gmra.mxu0 %v122
    %v124 = vpop.f32.mrf.mxu0
    %v125 = vadd.f32 0.0, %v124
    %v126 = vand.u32 %v96, 4294901760
    %v127 = vsub.f32 %v96, %v126
    %v128 = vand.u32 %v127, 4294901760
    %v129 = vsub.f32 %v127, %v128
    %v130 = vand.u32 %v129, 4294901760
    %131 = vmatmul.f32.gmra.mxu0 %v130
    %v132 = vpop.f32.mrf.mxu0
    %v133 = vadd.f32 0.0, %v132
    %134 = vdwg.mxu0
    %135 = vmatpush.msra.mxu0 0.0
    %136 = vmatpush.msra.mxu0 0.0
    %137 = vmatpush.msra.mxu0 0.0
    %138 = vmatpush.msra.mxu0 0.0
    %139 = vmatpush.msra.mxu0 0.0
    %140 = vmatpush.msra.mxu0 0.0
    %141 = vmatpush.msra.mxu0 0.0
    %142 = vmatpush.msra.mxu0 0.0
    %143 = vmatpush.msra.mxu0 0.0
    %144 = vmatpush.msra.mxu0 0.0
    %145 = vmatpush.msra.mxu0 0.0
    %146 = vmatpush.msra.mxu0 0.0
    %v147 = vand.u32 %v90, 4294901760
    %v148 = vsub.f32 %v90, %v147
    %v149 = vand.u32 %v148, 4294901760
    %v150 = vsub.f32 %v148, %v149
    %v151 = vand.u32 %v150, 4294901760
    %152 = vmatpush.msra.mxu0 %v151
    %v153 = vand.u32 %v89, 4294901760
    %v154 = vsub.f32 %v89, %v153
    %v155 = vand.u32 %v154, 4294901760
    %v156 = vsub.f32 %v154, %v155
    %v157 = vand.u32 %v156, 4294901760
    %158 = vmatpush.msra.mxu0 %v157
    %v159 = vand.u32 %v88, 4294901760
    %v160 = vsub.f32 %v88, %v159
    %v161 = vand.u32 %v160, 4294901760
    %v162 = vsub.f32 %v160, %v161
    %v163 = vand.u32 %v162, 4294901760
    %164 = vmatpush.msra.mxu0 %v163
    %v165 = vand.u32 %v87, 4294901760
    %v166 = vsub.f32 %v87, %v165
    %v167 = vand.u32 %v166, 4294901760
    %v168 = vsub.f32 %v166, %v167
    %v169 = vand.u32 %v168, 4294901760
    %170 = vmatpush.msra.mxu0 %v169
    %v171 = vand.u32 %v93, 4294901760
    %172 = vmatmul.f32.gmra.mxu0 %v171
    %v173 = vpop.f32.mrf.mxu0
    %v174 = vadd.f32 %v125, %v173
    %v175 = vand.u32 %v96, 4294901760
    %176 = vmatmul.f32.gmra.mxu0 %v175
    %v177 = vpop.f32.mrf.mxu0
    %v178 = vadd.f32 %v133, %v177
    %179 = vdwg.mxu0
    %180 = vmatpush.msra.mxu0 0.0
    %181 = vmatpush.msra.mxu0 0.0
    %182 = vmatpush.msra.mxu0 0.0
    %183 = vmatpush.msra.mxu0 0.0
    %184 = vmatpush.msra.mxu0 0.0
    %185 = vmatpush.msra.mxu0 0.0
    %186 = vmatpush.msra.mxu0 0.0
    %187 = vmatpush.msra.mxu0 0.0
    %188 = vmatpush.msra.mxu0 0.0
    %189 = vmatpush.msra.mxu0 0.0
    %190 = vmatpush.msra.mxu0 0.0
    %191 = vmatpush.msra.mxu0 0.0
    %v192 = vand.u32 %v90, 4294901760
    %v193 = vsub.f32 %v90, %v192
    %194 = vmatpush.msra.mxu0 %v193
    %v195 = vand.u32 %v89, 4294901760
    %v196 = vsub.f32 %v89, %v195
    %197 = vmatpush.msra.mxu0 %v196
    %v198 = vand.u32 %v88, 4294901760
    %v199 = vsub.f32 %v88, %v198
    %200 = vmatpush.msra.mxu0 %v199
    %v201 = vand.u32 %v87, 4294901760
    %v202 = vsub.f32 %v87, %v201
    %203 = vmatpush.msra.mxu0 %v202
    %v204 = vand.u32 %v93, 4294901760
    %v205 = vsub.f32 %v93, %v204
    %206 = vmatmul.f32.gmra.mxu0 %v205
    %v207 = vpop.f32.mrf.mxu0
    %v208 = vadd.f32 %v174, %v207
    %v209 = vand.u32 %v96, 4294901760
    %v210 = vsub.f32 %v96, %v209
    %211 = vmatmul.f32.gmra.mxu0 %v210
    %v212 = vpop.f32.mrf.mxu0
    %v213 = vadd.f32 %v178, %v212
    %214 = vdwg.mxu0
    %215 = vmatpush.msra.mxu0 0.0
    %216 = vmatpush.msra.mxu0 0.0
    %217 = vmatpush.msra.mxu0 0.0
    %218 = vmatpush.msra.mxu0 0.0
    %219 = vmatpush.msra.mxu0 0.0
    %220 = vmatpush.msra.mxu0 0.0
    %221 = vmatpush.msra.mxu0 0.0
    %222 = vmatpush.msra.mxu0 0.0
    %223 = vmatpush.msra.mxu0 0.0
    %224 = vmatpush.msra.mxu0 0.0
    %225 = vmatpush.msra.mxu0 0.0
    %226 = vmatpush.msra.mxu0 0.0
    %v227 = vand.u32 %v90, 4294901760
    %228 = vmatpush.msra.mxu0 %v227
    %v229 = vand.u32 %v89, 4294901760
    %230 = vmatpush.msra.mxu0 %v229
    %v231 = vand.u32 %v88, 4294901760
    %232 = vmatpush.msra.mxu0 %v231
    %v233 = vand.u32 %v87, 4294901760
    %234 = vmatpush.msra.mxu0 %v233
    %v235 = vand.u32 %v93, 4294901760
    %v236 = vsub.f32 %v93, %v235
    %v237 = vand.u32 %v236, 4294901760
    %238 = vmatmul.f32.gmra.mxu0 %v237
    %v239 = vpop.f32.mrf.mxu0
    %v240 = vadd.f32 %v208, %v239
    %v241 = vand.u32 %v96, 4294901760
    %v242 = vsub.f32 %v96, %v241
    %v243 = vand.u32 %v242, 4294901760
    %244 = vmatmul.f32.gmra.mxu0 %v243
    %v245 = vpop.f32.mrf.mxu0
    %v246 = vadd.f32 %v213, %v245
    %247 = vdwg.mxu0
    %248 = vmatpush.msra.mxu0 0.0
    %249 = vmatpush.msra.mxu0 0.0
    %250 = vmatpush.msra.mxu0 0.0
    %251 = vmatpush.msra.mxu0 0.0
    %252 = vmatpush.msra.mxu0 0.0
    %253 = vmatpush.msra.mxu0 0.0
    %254 = vmatpush.msra.mxu0 0.0
    %255 = vmatpush.msra.mxu0 0.0
    %256 = vmatpush.msra.mxu0 0.0
    %257 = vmatpush.msra.mxu0 0.0
    %258 = vmatpush.msra.mxu0 0.0
    %259 = vmatpush.msra.mxu0 0.0
    %v260 = vand.u32 %v90, 4294901760
    %v261 = vsub.f32 %v90, %v260
    %v262 = vand.u32 %v261, 4294901760
    %263 = vmatpush.msra.mxu0 %v262
    %v264 = vand.u32 %v89, 4294901760
    %v265 = vsub.f32 %v89, %v264
    %v266 = vand.u32 %v265, 4294901760
    %267 = vmatpush.msra.mxu0 %v266
    %v268 = vand.u32 %v88, 4294901760
    %v269 = vsub.f32 %v88, %v268
    %v270 = vand.u32 %v269, 4294901760
    %271 = vmatpush.msra.mxu0 %v270
    %v272 = vand.u32 %v87, 4294901760
    %v273 = vsub.f32 %v87, %v272
    %v274 = vand.u32 %v273, 4294901760
    %275 = vmatpush.msra.mxu0 %v274
    %v276 = vand.u32 %v93, 4294901760
    %277 = vmatmul.f32.gmra.mxu0 %v276
    %v278 = vpop.f32.mrf.mxu0
    %v279 = vadd.f32 %v240, %v278
    %v280 = vand.u32 %v96, 4294901760
    %281 = vmatmul.f32.gmra.mxu0 %v280
    %v282 = vpop.f32.mrf.mxu0
    %v283 = vadd.f32 %v246, %v282
    %284 = vdwg.mxu0
    %285 = vmatpush.msra.mxu0 0.0
    %286 = vmatpush.msra.mxu0 0.0
    %287 = vmatpush.msra.mxu0 0.0
    %288 = vmatpush.msra.mxu0 0.0
    %289 = vmatpush.msra.mxu0 0.0
    %290 = vmatpush.msra.mxu0 0.0
    %291 = vmatpush.msra.mxu0 0.0
    %292 = vmatpush.msra.mxu0 0.0
    %293 = vmatpush.msra.mxu0 0.0
    %294 = vmatpush.msra.mxu0 0.0
    %295 = vmatpush.msra.mxu0 0.0
    %296 = vmatpush.msra.mxu0 0.0
    %v297 = vand.u32 %v90, 4294901760
    %298 = vmatpush.msra.mxu0 %v297
    %v299 = vand.u32 %v89, 4294901760
    %300 = vmatpush.msra.mxu0 %v299
    %v301 = vand.u32 %v88, 4294901760
    %302 = vmatpush.msra.mxu0 %v301
    %v303 = vand.u32 %v87, 4294901760
    %304 = vmatpush.msra.mxu0 %v303
    %v305 = vand.u32 %v93, 4294901760
    %306 = vmatmul.f32.gmra.mxu0 %v305
    %v307 = vpop.f32.mrf.mxu0
    %v308 = vadd.f32 %v279, %v307
    %v309 = vand.u32 %v96, 4294901760
    %310 = vmatmul.f32.gmra.mxu0 %v309
    %v311 = vpop.f32.mrf.mxu0
    %v312 = vadd.f32 %v283, %v311
    %313 = vdwg.mxu0
    %v314 = vand.u32 2147483647, %v81
    %v315 = vand.u32 2147483647, %v82
    %v316 = vsub.f32 0.0, %v314
    %v317 = vsub.f32 0.0, %v315
    %v318 = vmul.f32 %v316, 1.442695
    %v319 = vpow.pop %v318
    %v320 = vmul.f32 %v317, 1.442695
    %v321 = vpow.pop %v320
    %v322 = vadd.f32 %v319, 1.0
    %v323 = vadd.f32 %v321, 1.0
    %v324 = vrcp.pop %v322
    %v325 = vmul.f32 %v322, %v324
    %v326 = vsub.f32 1.0, %v325
    %v327 = vmul.f32 %v324, %v326
    %v328 = vadd.f32 %v324, %v327
    %vm329 = vweird.f32 %v322
    %vm330 = vweird.f32 %v324
    %vm331 = vmor %vm329, %vm330
    %v332 = vsel %vm331, %v324, %v328
    %v333 = vand.u32 2147483647, %v322
    %vm334 = vcmp.eq.f32.partialorder %v333, 8.507059e+37
    %v335 = vand.u32 %v322, 2147483648
    %v336 = vor.u32 1.1754944e-38, %v335
    %v337 = vsel %vm334, %v336, %v332
    %v338 = vmul.f32 1.0, %v337
    %v339 = vrcp.pop %v323
    %v340 = vmul.f32 %v323, %v339
    %v341 = vsub.f32 1.0, %v340
    %v342 = vmul.f32 %v339, %v341
    %v343 = vadd.f32 %v339, %v342
    %vm344 = vweird.f32 %v323
    %vm345 = vweird.f32 %v339
    %vm346 = vmor %vm344, %vm345
    %v347 = vsel %vm346, %v339, %v343
    %v348 = vand.u32 2147483647, %v323
    %vm349 = vcmp.eq.f32.partialorder %v348, 8.507059e+37
    %v350 = vand.u32 %v323, 2147483648
    %v351 = vor.u32 1.1754944e-38, %v350
    %v352 = vsel %vm349, %v351, %v347
    %v353 = vmul.f32 1.0, %v352
    %vm354 = vcmp.ge.f32.partialorder %v81, 0.0
    %vm355 = vcmp.ge.f32.partialorder %v82, 0.0
    %v356 = vmul.f32 %v319, %v338
    %v357 = vmul.f32 %v321, %v353
    %v358 = vsel %vm354, %v338, %v356
    %v359 = vsel %vm355, %v353, %v357
    %v360 = vmul.f32 %v83, -0.5
    %v361 = vmul.f32 %v84, -0.5
    %v362 = vadd.f32 %v360, 0.75
    %v363 = vadd.f32 %v361, 0.75
    %v364 = vmul.f32 %v358, 2.0
    %v365 = vmul.f32 %v359, 2.0
    %v366 = vsub.f32 1.0, %v364
    %v367 = vsub.f32 1.0, %v365
    %v368 = vmul.f32 %v83, %v366
    %v369 = vmul.f32 %v84, %v367
    %v370 = vadd.f32 %v358, %v368
    %v371 = vadd.f32 %v359, %v369
    %v372 = vmul.f32 %v370, %v370
    %v373 = vmul.f32 %v371, %v371
    %v374 = vmul.f32 %v362, %v372
    %v375 = vmul.f32 %v363, %v373
    %v376 = vmax.f32 %v81, 0.0
    %v377 = vmax.f32 %v82, 0.0
    %v378 = vmul.f32 %v81, %v83
    %v379 = vmul.f32 %v82, %v84
    %v380 = vsub.f32 %v376, %v378
    %v381 = vsub.f32 %v377, %v379
    %v382 = vadd.f32 %v319, 1.0
    %v383 = vlog2.pop %v382
    %v384 = vmul.f32 %v383, 0.6931472
    %v385 = vmul.f32 -0.5, %v319
    %v386 = vadd.f32 %v385, 1.0
    %v387 = vmul.f32 %v386, %v319
    %v388 = vand.u32 2147483647, %v319
    %vm389 = vcmp.lt.f32.partialorder %v388, 0.0004427343
    %v390 = vsel %vm389, %v387, %v384
    %v391 = vadd.f32 %v321, 1.0
    %v392 = vlog2.pop %v391
    %v393 = vmul.f32 %v392, 0.6931472
    %v394 = vmul.f32 -0.5, %v321
    %v395 = vadd.f32 %v394, 1.0
    %v396 = vmul.f32 %v395, %v321
    %v397 = vand.u32 2147483647, %v321
    %vm398 = vcmp.lt.f32.partialorder %v397, 0.0004427343
    %v399 = vsel %vm398, %v396, %v393
    %v400 = vadd.f32 %v380, %v390
    %v401 = vadd.f32 %v381, %v399
    %v402 = vmul.f32 %v374, %v400
    %v403 = vmul.f32 %v375, %v401
    %v404 = vmul.f32 %v402, %v308
    %v405 = vmul.f32 %v403, %v312
    %406 = vst [vmem:[#allocation10] sm:$0xff] %v404
    %407 = vst [vmem:[#allocation10 + $0x8] sm:$0xff] %v405
    // Predicated region
    $region34: #{tpu_custom_call.1} parent=1 // pred_check
      _
    $region35: #{tpu_custom_call.1} parent=1 // pred_check_branch
      %409 = sbr.rel (0) target = $region37
    $region36: #{tpu_custom_call.1} parent=1 // pred_region
      %411 = vsyncadd [#allocation4], 0
      %s412 = sshll.u32 [#allocation10], 4
      %s413 = int_to_ptr.vmem [resolvable:$true] %s412
      %s414 = sshll.u32 %s4, 4
      %s415 = int_to_ptr.hbm [resolvable:$true] %s414
      %420 = dma.vmem_to_hbm [thread:$0]  %s413, 256, %s415, [#allocation4], 128, 128, 8
    $region37: #{tpu_custom_call.1} parent=1 // pred_fallthru
      _
    // Predicated region
    $region38: #{tpu_custom_call.1} parent=1 // pred_check
      _
    $region39: #{tpu_custom_call.1} parent=1 // pred_check_branch
      %422 = sbr.rel (0) target = $region41
    $region40: #{tpu_custom_call.1} parent=1 // pred_region
      %424 = dma.done [#allocation4], 256
    $region41: #{tpu_custom_call.1} parent=1 // pred_fallthru
      _
    %425 = vsyncpa [#allocation3], 1
    %426 = vsyncpa [#allocation6], 1
    %427 = vsyncpa [#allocation9], 1
    %428 = vsyncpa [#allocation4], 1

</llo_original>
